<compile_context>
chip_gen: v7x
topology: tpu7x:2x2x1
jax: 0.10.0
libtpu: 0.0.40
codegen_flags: <defaults>
</compile_context>

<pallas_src>
import functools

import jax
import jax.numpy as jnp
from jax.experimental import pallas as pl
from jax.experimental.pallas import tpu as pltpu

_LANE = 128


def _round_up(v, m):
    return ((v + m - 1) // m) * m


def _physical_vmem_bytes():
    try:
        return int(pltpu.get_tpu_info().vmem_capacity_bytes)
    except Exception:
        return 64 * 1024 * 1024  # conservative default (v7x per-TC VMEM)


def fuse_film_params(wg, bg, wb, bb):
    """Fuse the two FiLM linears into one weight/bias pair.  Call ONCE at init.

    wg, wb: [in_f, out_f]  (transposed vs. PyTorch nn.Linear)
    bg, bb: [1, out_f]
    Returns (w_fused [in_f, 2*out_f_pad], b_fused [1, 2*out_f_pad]) with
    out_f padded up to a lane-tile (128) multiple so the in-kernel gamma/beta
    slice is free and output stores stay unmasked/lane-dense.
    """
    in_f, out_f = wg.shape
    out_f_pad = _round_up(out_f, _LANE)
    if out_f_pad != out_f:
        pc = out_f_pad - out_f
        wg = jnp.pad(wg, ((0, 0), (0, pc)))
        wb = jnp.pad(wb, ((0, 0), (0, pc)))
        bg = jnp.pad(bg, ((0, 0), (0, pc)))
        bb = jnp.pad(bb, ((0, 0), (0, pc)))
    w = jnp.concatenate([wg, wb], axis=1)  # [in_f, 2*out_f_pad]
    b = jnp.concatenate([bg, bb], axis=1)  # [1, 2*out_f_pad]
    return w, b


def film_kernel(x_ref, cond_ref, w_ref, b_ref, out_ref, *, out_features):
    # Single fused matmul: cond @ [Wg | Wb] + [bg | bb]  ->  [bt, 2*out_f_pad]
    gb = (
        jnp.dot(cond_ref[...], w_ref[...], preferred_element_type=jnp.float32)
        + b_ref[...]
    )
    # Column slice at a lane-tile boundary -> free.
    gamma = jnp.tanh(gb[:, :out_features])  # tanh runs on the EUP slot (hidden)
    beta = gb[:, out_features:]
    out_ref[...] = (gamma * x_ref[...] + beta).astype(out_ref.dtype)


def film_forward(x, condition, w_fused, b_fused, *, batch_tile=None):
    """FiLM forward.

    x:         [B, out_f]  feature to modulate
    condition: [B, in_f]
    w_fused:   [in_f, 2*out_f_pad]   from fuse_film_params (hoisted out of hot path)
    b_fused:   [1, 2*out_f_pad]
    """
    B, out_f = x.shape
    _, in_f = condition.shape
    two_out = w_fused.shape[1]
    out_f_pad = two_out // 2
    assert out_f_pad % _LANE == 0, "use fuse_film_params() to lane-pad the weights"
    assert out_f_pad >= out_f

    act_bytes = jnp.dtype(x.dtype).itemsize
    w_bytes = jnp.dtype(w_fused.dtype).itemsize
    sub = max(8, 32 // act_bytes)  # sublane granularity: 8 rows f32, 16 rows bf16

    # Pad the feature dim of x to the lane-padded width (usually a no-op).
    if out_f_pad != out_f:
        x = jnp.pad(x, ((0, 0), (0, out_f_pad - out_f)))

    # ---- Batch tiling (memory/overhead bound kernel -> big tiles).
    if batch_tile is None:
        if B < 256:
            batch_tile = B                 # single step; problem is tiny
        elif B <= 8192:
            batch_tile = pl.cdiv(B, 2)     # exactly 2 steps -> both v7x TCs busy
        else:
            batch_tile = 4096              # amortize ~0.35 us per-step overhead
    batch_tile = max(sub, _round_up(min(batch_tile, B), sub))

    # ---- VMEM budget (includes the f32 gb intermediate), generation-aware cap.
    vmem_cap = (_physical_vmem_bytes() * 3) // 4

    def est_vmem(bt, weight_bufs):
        streamed = 2 * bt * (2 * out_f_pad + in_f) * act_bytes   # x, cond, out (dbl-buffered)
        interm = 2 * bt * (2 * out_f_pad) * 4                    # gb + gamma/beta temporaries
        weights = weight_bufs * (in_f * two_out + two_out) * w_bytes
        return streamed + interm + weights

    # Shrink the tile rather than exceed the physical-VMEM-derived cap.
    while batch_tile > sub and 2 * est_vmem(batch_tile, 2) > vmem_cap:
        batch_tile = max(sub, _round_up(batch_tile // 2, sub))

    grid_b = pl.cdiv(B, batch_tile)
    b_padded = grid_b * batch_tile
    if b_padded != B:
        pad = b_padded - B
        x = jnp.pad(x, ((0, pad), (0, 0)))
        condition = jnp.pad(condition, ((0, pad), (0, 0)))

    # Always set an explicit limit (v5e's default scoped limit is only 16 MiB),
    # with 2x headroom, floored at 16 MiB and capped below physical VMEM.
    vmem_limit = int(min(max(2 * est_vmem(batch_tile, 2), 16 * 1024 * 1024), vmem_cap))

    kernel = functools.partial(film_kernel, out_features=out_f_pad)

    def run(single_buffer_weights):
        if single_buffer_weights:
            # Constant index_map -> grid-resident; one buffer is enough.
            w_spec = pl.BlockSpec((in_f, two_out), lambda i: (0, 0),
                                  pipeline_mode=pl.Buffered(1))
            bias_spec = pl.BlockSpec((1, two_out), lambda i: (0, 0),
                                     pipeline_mode=pl.Buffered(1))
        else:
            w_spec = pl.BlockSpec((in_f, two_out), lambda i: (0, 0))
            bias_spec = pl.BlockSpec((1, two_out), lambda i: (0, 0))
        out = pl.pallas_call(
            kernel,
            out_shape=jax.ShapeDtypeStruct((b_padded, out_f_pad), x.dtype),
            grid=(grid_b,),
            in_specs=[
                pl.BlockSpec((batch_tile, out_f_pad), lambda i: (i, 0)),  # x tile
                pl.BlockSpec((batch_tile, in_f), lambda i: (i, 0)),       # condition tile
                w_spec,                                                   # fused Wg|Wb
                bias_spec,                                                # fused bg|bb
            ],
            out_specs=pl.BlockSpec((batch_tile, out_f_pad), lambda i: (i, 0)),
            compiler_params=pltpu.CompilerParams(
                dimension_semantics=("parallel",),
                vmem_limit_bytes=vmem_limit,
            ),
        )(x, condition, w_fused, b_fused)
        return jax.block_until_ready(out)

    try:
        out = run(True)
    except Exception:
        # Fallback if this JAX build rejects single-buffered pipeline_mode.
        out = run(False)

    if b_padded != B:
        out = out[:B]
    if out_f_pad != out_f:
        out = out[:, :out_f]
    return out


if __name__ == "__main__":
    # Small shapes consistent with the module: FiLM(in_features=32, out_features=128)
    B, in_f, out_f = 16, 32, 128

    key = jax.random.PRNGKey(0)
    kx, kc, kwg, kbg, kwb, kbb = jax.random.split(key, 6)

    x = jax.random.normal(kx, (B, out_f), dtype=jnp.float32)
    condition = jax.random.normal(kc, (B, in_f), dtype=jnp.float32)

    # Deterministic parameter init (uniform like PyTorch Linear default range).
    bound = 1.0 / jnp.sqrt(in_f)
    # PyTorch Linear weight is [out_f, in_f]; store transposed [in_f, out_f] for the kernel.
    wg = jax.random.uniform(kwg, (in_f, out_f), jnp.float32, -bound, bound)
    bg = jax.random.uniform(kbg, (1, out_f), jnp.float32, -bound, bound)
    wb = jax.random.uniform(kwb, (in_f, out_f), jnp.float32, -bound, bound)
    bb = jax.random.uniform(kbb, (1, out_f), jnp.float32, -bound, bound)

    # Fuse once at "module build" time (hoisted out of the forward hot path).
    w_fused, b_fused = fuse_film_params(wg, bg, wb, bb)
    w_fused, b_fused = jax.block_until_ready((w_fused, b_fused))

    out = film_forward(x, condition, w_fused, b_fused)
    out = jax.block_until_ready(out)

    # Pure-JAX reference check.
    gamma_ref = jnp.tanh(condition @ wg + bg)
    beta_ref = condition @ wb + bb
    ref = gamma_ref * x + beta_ref
    assert out.shape == ref.shape, "shape mismatch vs reference"
    assert jnp.allclose(out, ref, atol=1e-5, rtol=1e-5), "mismatch vs reference"

    print("KERNEL_OK")
</pallas_src>

<mosaic_0001>
module attributes {stable_mosaic.version = 11 : i64} {
  func.func @film_kernel(%arg0: i32, %arg1: memref<16x128xf32, #tpu.memory_space<vmem>>, %arg2: memref<16x32xf32, #tpu.memory_space<vmem>>, %arg3: memref<32x256xf32, #tpu.memory_space<vmem>>, %arg4: memref<1x256xf32, #tpu.memory_space<vmem>>, %arg5: memref<16x128xf32, #tpu.memory_space<vmem>>) attributes {dimension_semantics = [#tpu.dimension_semantics<parallel>], iteration_bounds = array<i64: 1>, scalar_prefetch = 0 : i64, scratch_operands = 0 : i64, tpu.core_type = #tpu.core_type<tc>, window_params = [{transform_indices = @transform_0, window_bounds = array<i64: 16, 128>}, {transform_indices = @transform_1, window_bounds = array<i64: 16, 32>}, {pipeline_mode = #tpu.pipeline_mode<synchronous>, transform_indices = @transform_2, window_bounds = array<i64: 32, 256>}, {pipeline_mode = #tpu.pipeline_mode<synchronous>, transform_indices = @transform_3, window_bounds = array<i64: 1, 256>}, {transform_indices = @transform_4, window_bounds = array<i64: 16, 128>}]} {
    %c0 = arith.constant 0 : index
    %c0_0 = arith.constant 0 : index
    %0 = vector.load %arg2[%c0, %c0_0] : memref<16x32xf32, #tpu.memory_space<vmem>>, vector<16x32xf32>
    %c0_1 = arith.constant 0 : index
    %c0_2 = arith.constant 0 : index
    %1 = vector.load %arg3[%c0_1, %c0_2] : memref<32x256xf32, #tpu.memory_space<vmem>>, vector<32x256xf32>
    %cst = arith.constant dense<0.000000e+00> : vector<16x256xf32>
    %2 = tpu.matmul %0, %1, %cst {dimension_numbers = #tpu.dot_dimension_numbers<[1], [0], [0], [1], [0, 0, 1, 1], [], []>} : vector<16x32xf32>, vector<32x256xf32>, vector<16x256xf32> -> vector<16x256xf32>
    %c0_3 = arith.constant 0 : index
    %c0_4 = arith.constant 0 : index
    %3 = vector.load %arg4[%c0_3, %c0_4] : memref<1x256xf32, #tpu.memory_space<vmem>>, vector<1x256xf32>
    %4 = vector.broadcast %3 : vector<1x256xf32> to vector<16x256xf32>
    %5 = arith.addf %2, %4 : vector<16x256xf32>
    %6 = vector.extract_strided_slice %5 {offsets = [0, 0], sizes = [16, 128], strides = [1, 1]} : vector<16x256xf32> to vector<16x128xf32>
    %7 = math.tanh %6 : vector<16x128xf32>
    %8 = vector.extract_strided_slice %5 {offsets = [0, 128], sizes = [16, 128], strides = [1, 1]} : vector<16x256xf32> to vector<16x128xf32>
    %c0_5 = arith.constant 0 : index
    %c0_6 = arith.constant 0 : index
    %9 = vector.load %arg1[%c0_5, %c0_6] : memref<16x128xf32, #tpu.memory_space<vmem>>, vector<16x128xf32>
    %10 = arith.mulf %7, %9 : vector<16x128xf32>
    %11 = arith.addf %10, %8 : vector<16x128xf32>
    %c0_7 = arith.constant 0 : index
    %c0_8 = arith.constant 0 : index
    %12 = vector.load %arg5[%c0_7, %c0_8] : memref<16x128xf32, #tpu.memory_space<vmem>>, vector<16x128xf32>
    tpu.vector_store %arg5[%c0_7, %c0_8], %11 {strides = array<i32>} : memref<16x128xf32, #tpu.memory_space<vmem>>, vector<16x128xf32>,
    return
  }
  func.func @transform_0(%arg0: i32) -> (i32, i32) {
    %c0_i32 = arith.constant 0 : i32
    %c0_i32_0 = arith.constant 0 : i32
    return %arg0, %c0_i32 : i32, i32
  }
  func.func @transform_1(%arg0: i32) -> (i32, i32) {
    %c0_i32 = arith.constant 0 : i32
    %c0_i32_0 = arith.constant 0 : i32
    return %arg0, %c0_i32 : i32, i32
  }
  func.func @transform_2(%arg0: i32) -> (i32, i32) {
    %c0_i32 = arith.constant 0 : i32
    %c0_i32_0 = arith.constant 0 : i32
    %c0_i32_1 = arith.constant 0 : i32
    return %c0_i32, %c0_i32_0 : i32, i32
  }
  func.func @transform_3(%arg0: i32) -> (i32, i32) {
    %c0_i32 = arith.constant 0 : i32
    %c0_i32_0 = arith.constant 0 : i32
    %c0_i32_1 = arith.constant 0 : i32
    return %c0_i32, %c0_i32_0 : i32, i32
  }
  func.func @transform_4(%arg0: i32) -> (i32, i32) {
    %c0_i32 = arith.constant 0 : i32
    %c0_i32_0 = arith.constant 0 : i32
    return %arg0, %c0_i32 : i32, i32
  }
}

module attributes {stable_mosaic.version = 11 : i64} {
  func.func @film_kernel(%arg0: i32, %arg1: memref<16x128xf32, #tpu.memory_space<vmem>>, %arg2: memref<16x32xf32, #tpu.memory_space<vmem>>, %arg3: memref<32x256xf32, #tpu.memory_space<vmem>>, %arg4: memref<1x256xf32, #tpu.memory_space<vmem>>, %arg5: memref<16x128xf32, #tpu.memory_space<vmem>>) attributes {dimension_semantics = [#tpu.dimension_semantics<parallel>], iteration_bounds = array<i64: 1>, scalar_prefetch = 0 : i64, scratch_operands = 0 : i64, tpu.core_type = #tpu.core_type<tc>, window_params = [{transform_indices = @transform_0, window_bounds = array<i64: 16, 128>}, {transform_indices = @transform_1, window_bounds = array<i64: 16, 32>}, {pipeline_mode = #tpu.pipeline_mode<synchronous>, transform_indices = @transform_2, window_bounds = array<i64: 32, 256>}, {pipeline_mode = #tpu.pipeline_mode<synchronous>, transform_indices = @transform_3, window_bounds = array<i64: 1, 256>}, {transform_indices = @transform_4, window_bounds = array<i64: 16, 128>}]} {
    %c0 = arith.constant 0 : index
    %c0_0 = arith.constant 0 : index
    %0 = vector.load %arg2[%c0, %c0_0] : memref<16x32xf32, #tpu.memory_space<vmem>>, vector<16x32xf32>
    %c0_1 = arith.constant 0 : index
    %c0_2 = arith.constant 0 : index
    %1 = vector.load %arg3[%c0_1, %c0_2] : memref<32x256xf32, #tpu.memory_space<vmem>>, vector<32x256xf32>
    %cst = arith.constant dense<0.000000e+00> : vector<16x256xf32>
    %2 = tpu.matmul %0, %1, %cst {dimension_numbers = #tpu.dot_dimension_numbers<[1], [0], [0], [1], [0, 0, 1, 1], [], []>} : vector<16x32xf32>, vector<32x256xf32>, vector<16x256xf32> -> vector<16x256xf32>
    %c0_3 = arith.constant 0 : index
    %c0_4 = arith.constant 0 : index
    %3 = vector.load %arg4[%c0_3, %c0_4] : memref<1x256xf32, #tpu.memory_space<vmem>>, vector<1x256xf32>
    %4 = vector.broadcast %3 : vector<1x256xf32> to vector<16x256xf32>
    %5 = arith.addf %2, %4 : vector<16x256xf32>
    %6 = vector.extract_strided_slice %5 {offsets = [0, 0], sizes = [16, 128], strides = [1, 1]} : vector<16x256xf32> to vector<16x128xf32>
    %7 = math.tanh %6 : vector<16x128xf32>
    %8 = vector.extract_strided_slice %5 {offsets = [0, 128], sizes = [16, 128], strides = [1, 1]} : vector<16x256xf32> to vector<16x128xf32>
    %c0_5 = arith.constant 0 : index
    %c0_6 = arith.constant 0 : index
    %9 = vector.load %arg1[%c0_5, %c0_6] : memref<16x128xf32, #tpu.memory_space<vmem>>, vector<16x128xf32>
    %10 = arith.mulf %7, %9 : vector<16x128xf32>
    %11 = arith.addf %10, %8 : vector<16x128xf32>
    %c0_7 = arith.constant 0 : index
    %c0_8 = arith.constant 0 : index
    %12 = vector.load %arg5[%c0_7, %c0_8] : memref<16x128xf32, #tpu.memory_space<vmem>>, vector<16x128xf32>
    tpu.vector_store %arg5[%c0_7, %c0_8], %11 {strides = array<i32>} : memref<16x128xf32, #tpu.memory_space<vmem>>, vector<16x128xf32>,
    return
  }
  func.func @transform_0(%arg0: i32) -> (i32, i32) {
    %c0_i32 = arith.constant 0 : i32
    %c0_i32_0 = arith.constant 0 : i32
    return %arg0, %c0_i32 : i32, i32
  }
  func.func @transform_1(%arg0: i32) -> (i32, i32) {
    %c0_i32 = arith.constant 0 : i32
    %c0_i32_0 = arith.constant 0 : i32
    return %arg0, %c0_i32 : i32, i32
  }
  func.func @transform_2(%arg0: i32) -> (i32, i32) {
    %c0_i32 = arith.constant 0 : i32
    %c0_i32_0 = arith.constant 0 : i32
    %c0_i32_1 = arith.constant 0 : i32
    return %c0_i32, %c0_i32_0 : i32, i32
  }
  func.func @transform_3(%arg0: i32) -> (i32, i32) {
    %c0_i32 = arith.constant 0 : i32
    %c0_i32_0 = arith.constant 0 : i32
    %c0_i32_1 = arith.constant 0 : i32
    return %c0_i32, %c0_i32_0 : i32, i32
  }
  func.func @transform_4(%arg0: i32) -> (i32, i32) {
    %c0_i32 = arith.constant 0 : i32
    %c0_i32_0 = arith.constant 0 : i32
    return %arg0, %c0_i32 : i32, i32
  }
}

</mosaic_0001>

<llo_original>
// kernel: tpu_custom_call.1
$region0: #{tpu_custom_call.1}
  #allocation0 [shape = 'u32[]', space=smem, size = 0x4, offset = 0x4, fixed_abs, tag = 'smem constant byte address 0x4 - core index']
  #allocation1 [shape = 'u32[144,128]{1,0:T(1,128)}', space=vmem, size = 0x12000, scoped, tag = 'internal scratch']
  %s0 = inlined_call_operand.hbm [shape: f32[16,128], index: 0, kind: input, shape index: {}]
  %s1 = inlined_call_operand.hbm [shape: f32[16,32], index: 1, kind: input, shape index: {}]
  %s2 = inlined_call_operand.hbm [shape: f32[32,256], index: 2, kind: input, shape index: {}]
  %s3 = inlined_call_operand.vmem [shape: f32[1,256], index: 3, kind: input, shape index: {}]
  %s4 = inlined_call_operand.hbm [shape: f32[16,128], index: 4, kind: output, shape index: {}]
  %s5 = sld [smem:[#allocation0]]
  $region38: #{tpu_custom_call.1} parent=0
    _
  %s7 = ssub.s32 1, %s5
  %s8 = scalar_select 0, %s7, %s5
  $region1: #{tpu_custom_call.1} parent=0
    #allocation2 [shape = 'u8[8192]{0}', space=vmem, size = 0x2000, scoped, tag = 'input window, operand 0, single buffered']
    #allocation3 [shape = 's32[1]{0}', space=sflag, size = 0x4, scoped, tag = 'scoped memory for tpu_custom_call.1']
    #allocation4 [shape = 's32[1]{0}', space=sflag, size = 0x4, scoped, tag = 'scoped memory for tpu_custom_call.1']
    #allocation5 [shape = 'u8[8192]{0}', space=vmem, size = 0x2000, scoped, tag = 'input window, operand 1, single buffered']
    #allocation6 [shape = 's32[1]{0}', space=sflag, size = 0x4, scoped, tag = 'scoped memory for tpu_custom_call.1']
    #allocation7 [shape = 'u8[32768]{0}', space=vmem, size = 0x8000, scoped, tag = 'input window, operand 2, single buffered']
    #allocation8 [shape = 'u8[8192]{0}', space=vmem, size = 0x2000, scoped, tag = 'output window, operand 0, single buffered']
    %9 = vsyncpa [#allocation3], 0
    %10 = vsyncpa [#allocation6], 0
    %11 = vsyncpa [#allocation4], 0
    // Predicated region
    $region2: #{tpu_custom_call.1} parent=1 // pred_check
      _
    $region3: #{tpu_custom_call.1} parent=1 // pred_check_branch
      %13 = sbr.rel (0) target = $region5
    $region4: #{tpu_custom_call.1} parent=1 // pred_region
      %s15 = ssub.s32 256, 256
      %16 = vsyncadd [#allocation3], %s15
      %s17 = sshll.u32 [#allocation2], 4
      %s18 = int_to_ptr.vmem [resolvable:$true] %s17
      %23 = dma.hbm_to_vmem [thread:$0]  %s0, 256, %s18, [#allocation3], 128, 128, 8
    $region5: #{tpu_custom_call.1} parent=1 // pred_fallthru
      _
    // Predicated region
    $region6: #{tpu_custom_call.1} parent=1 // pred_check
      _
    $region7: #{tpu_custom_call.1} parent=1 // pred_check_branch
      %25 = sbr.rel (0) target = $region9
    $region8: #{tpu_custom_call.1} parent=1 // pred_region
      %s27 = ssub.s32 256, 256
      %28 = vsyncadd [#allocation6], %s27
      %s29 = sshll.u32 [#allocation5], 4
      %s30 = int_to_ptr.vmem [resolvable:$true] %s29
      %35 = dma.hbm_to_vmem [thread:$0]  %s1, 256, %s30, [#allocation6], 128, 128, 8
    $region9: #{tpu_custom_call.1} parent=1 // pred_fallthru
      _
    // Predicated region
    $region10: #{tpu_custom_call.1} parent=1 // pred_check
      _
    $region11: #{tpu_custom_call.1} parent=1 // pred_check_branch
      %37 = sbr.rel (0) target = $region13
    $region12: #{tpu_custom_call.1} parent=1 // pred_region
      %s39 = ssub.s32 1024, 1024
      %40 = vsyncadd [#allocation6], %s39
      %s41 = sshll.u32 [#allocation7], 4
      %s42 = int_to_ptr.vmem [resolvable:$true] %s41
      %47 = dma.hbm_to_vmem [thread:$0]  %s2, 1024, %s42, [#allocation6], 256, 256, 16
    $region13: #{tpu_custom_call.1} parent=1 // pred_fallthru
      _
    // Predicated region
    $region14: #{tpu_custom_call.1} parent=1 // pred_check
      _
    $region15: #{tpu_custom_call.1} parent=1 // pred_check_branch
      %49 = sbr.rel (0) target = $region17
    $region16: #{tpu_custom_call.1} parent=1 // pred_region
      _
    $region17: #{tpu_custom_call.1} parent=1 // pred_fallthru
      _
    // Predicated region
    $region18: #{tpu_custom_call.1} parent=1 // pred_check
      _
    $region19: #{tpu_custom_call.1} parent=1 // pred_check_branch
      %51 = sbr.rel (0) target = $region21
    $region20: #{tpu_custom_call.1} parent=1 // pred_region
      %52 = dma.done [#allocation3], 256
    $region21: #{tpu_custom_call.1} parent=1 // pred_fallthru
      _
    // Predicated region
    $region22: #{tpu_custom_call.1} parent=1 // pred_check
      _
    $region23: #{tpu_custom_call.1} parent=1 // pred_check_branch
      %54 = sbr.rel (0) target = $region25
    $region24: #{tpu_custom_call.1} parent=1 // pred_region
      %55 = dma.done [#allocation6], 256
    $region25: #{tpu_custom_call.1} parent=1 // pred_fallthru
      _
    // Predicated region
    $region26: #{tpu_custom_call.1} parent=1 // pred_check
      _
    $region27: #{tpu_custom_call.1} parent=1 // pred_check_branch
      %57 = sbr.rel (0) target = $region29
    $region28: #{tpu_custom_call.1} parent=1 // pred_region
      %58 = dma.done [#allocation6], 1024
    $region29: #{tpu_custom_call.1} parent=1 // pred_fallthru
      _
    %v59 = vld [vmem:[#allocation5] sm:$0xff]
    %v60 = vld [vmem:[#allocation5 + $0x8] sm:$0xff]
    %v61 = vld [vmem:[#allocation7] sm:$0xff]
    %v62 = vld [vmem:[#allocation7 + $0x8] sm:$0xff]
    %v63 = vld [vmem:[#allocation7 + $0x10] sm:$0xff]
    %v64 = vld [vmem:[#allocation7 + $0x18] sm:$0xff]
    %v65 = vld [vmem:[#allocation7 + $0x20] sm:$0xff]
    %v66 = vld [vmem:[#allocation7 + $0x28] sm:$0xff]
    %v67 = vld [vmem:[#allocation7 + $0x30] sm:$0xff]
    %v68 = vld [vmem:[#allocation7 + $0x38] sm:$0xff]
    %v69 = vld [vmem:[%s3] sm:$0x3]
    %v71 = vlaneseq
    %v72 = vshrl.u32 %v71, 7
    %v73 = vsub.s32 0, %v72
    %v74 = vrot.slane %v69, %v73
    %v75 = vlaneseq
    %v76 = vshrl.u32 %v75, 7
    %v77 = vsub.s32 1, %v76
    %v78 = vrot.slane %v69, %v77
    %vm81 = vcmask 261120
    %v83 = vsel %vm81, %v59, 0
    %v86 = vsel %vm81, %v60, 0
    %88 = vmatprep.subr.mxu0 %v62
    %89 = vmatpush1.msra.mxu0 %v61
    %90 = vmatprep.subr.mxu0 %v64
    %91 = vmatpush1.msra.mxu0 %v63
    %92 = vmatprep.subr.mxu0 %v66
    %93 = vmatpush1.msra.mxu0 %v65
    %94 = vmatprep.subr.mxu0 %v68
    %95 = vmatpush1.msra.mxu0 %v67
    %96 = vmatprep.subr.mxu0 0.0
    %97 = vmatpush1.msra.mxu0 0.0
    %98 = vmatprep.subr.mxu0 0.0
    %99 = vmatpush1.msra.mxu0 0.0
    %100 = vmatprep.subr.mxu0 0.0
    %101 = vmatpush1.msra.mxu0 0.0
    %102 = vmatprep.subr.mxu0 0.0
    %103 = vmatpush1.msra.mxu0 0.0
    %104 = vmatprep.subr.mxu0 0.0
    %105 = vmatpush1.msra.mxu0 0.0
    %106 = vmatprep.subr.mxu0 0.0
    %107 = vmatpush1.msra.mxu0 0.0
    %108 = vmatprep.subr.mxu0 0.0
    %109 = vmatpush1.msra.mxu0 0.0
    %110 = vmatprep.subr.mxu0 0.0
    %111 = vmatpush1.msra.mxu0 0.0
    %112 = vmatprep.subr.mxu0 0.0
    %113 = vmatpush1.msra.mxu0 0.0
    %114 = vmatprep.subr.mxu0 0.0
    %115 = vmatpush1.msra.mxu0 0.0
    %116 = vmatprep.subr.mxu0 0.0
    %117 = vmatpush1.msra.mxu0 0.0
    %118 = vmatprep.subr.mxu0 0.0
    %119 = vmatpush1.msra.mxu0 0.0
    %120 = vmatprep.subr.mxu0 0.0
    %121 = vmatpush1.msra.mxu0 0.0
    %122 = vmatprep.subr.mxu0 0.0
    %123 = vmatpush1.msra.mxu0 0.0
    %124 = vmatprep.subr.mxu0 0.0
    %125 = vmatpush1.msra.mxu0 0.0
    %126 = vmatprep.subr.mxu0 0.0
    %127 = vmatpush1.msra.mxu0 0.0
    %128 = vmatprep.subr.mxu0 0.0
    %129 = vmatpush1.msra.mxu0 0.0
    %130 = vmatprep.subr.mxu0 0.0
    %131 = vmatpush1.msra.mxu0 0.0
    %132 = vmatprep.subr.mxu0 0.0
    %133 = vmatpush1.msra.mxu0 0.0
    %134 = vmatprep.subr.mxu0 0.0
    %135 = vmatpush1.msra.mxu0 0.0
    %136 = vmatprep.subr.mxu0 0.0
    %137 = vmatpush1.msra.mxu0 0.0
    %138 = vmatprep.subr.mxu0 0.0
    %139 = vmatpush1.msra.mxu0 0.0
    %140 = vmatprep.subr.mxu0 0.0
    %141 = vmatpush1.msra.mxu0 0.0
    %142 = vmatprep.subr.mxu0 0.0
    %143 = vmatpush1.msra.mxu0 0.0
    %144 = vmatprep.subr.mxu0 0.0
    %145 = vmatpush1.msra.mxu0 0.0
    %146 = vmatprep.subr.mxu0 0.0
    %147 = vmatpush1.msra.mxu0 0.0
    %148 = vmatprep.subr.mxu0 0.0
    %149 = vmatpush1.msra.mxu0 0.0
    %150 = vmatprep.subr.mxu0 0.0
    %151 = vmatpush1.msra.mxu0 0.0
    %152 = vmatprep.mubr.f32.mxu0 0.0
    %153 = vmatmul.mubr.f32.gmra.mrb[0].mxu0 %v83
    %v154 = vpop.f32.mrb[0].mxu0
    %v155 = vadd.f32 %v74, %v154
    %v156 = vpop.f32.mrb[0].mxu0
    %v157 = vadd.f32 %v78, %v156
    %158 = vmatprep.mubr.f32.mxu0 0.0
    %159 = vmatmul.mubr.f32.gmra.mrb[0].mxu0 %v86
    %v160 = vpop.f32.mrb[0].mxu0
    %v161 = vadd.f32 %v74, %v160
    %v162 = vpop.f32.mrb[0].mxu0
    %v163 = vadd.f32 %v78, %v162
    %164 = vdwg.mxu0
    %v165 = vtanh.pop %v155
    %v166 = vtanh.pop %v161
    %v167 = vld [vmem:[#allocation2] sm:$0xff]
    %v168 = vld [vmem:[#allocation2 + $0x8] sm:$0xff]
    %v169 = vmul.f32 %v165, %v167
    %v170 = vmul.f32 %v166, %v168
    %v171 = vadd.f32 %v169, %v157
    %v172 = vadd.f32 %v170, %v163
    %173 = vst [vmem:[#allocation8] sm:$0xff] %v171
    %174 = vst [vmem:[#allocation8 + $0x8] sm:$0xff] %v172
    // Predicated region
    $region30: #{tpu_custom_call.1} parent=1 // pred_check
      _
    $region31: #{tpu_custom_call.1} parent=1 // pred_check_branch
      %176 = sbr.rel (0) target = $region33
    $region32: #{tpu_custom_call.1} parent=1 // pred_region
      %s178 = ssub.s32 256, 256
      %179 = vsyncadd [#allocation4], %s178
      %s180 = sshll.u32 [#allocation8], 4
      %s181 = int_to_ptr.vmem [resolvable:$true] %s180
      %186 = dma.vmem_to_hbm [thread:$0]  %s181, 256, %s4, [#allocation4], 128, 128, 8
    $region33: #{tpu_custom_call.1} parent=1 // pred_fallthru
      _
    // Predicated region
    $region34: #{tpu_custom_call.1} parent=1 // pred_check
      _
    $region35: #{tpu_custom_call.1} parent=1 // pred_check_branch
      %188 = sbr.rel (0) target = $region37
    $region36: #{tpu_custom_call.1} parent=1 // pred_region
      %189 = dma.done [#allocation4], 256
    $region37: #{tpu_custom_call.1} parent=1 // pred_fallthru
      _
    %190 = vsyncpa [#allocation3], 1
    %191 = vsyncpa [#allocation6], 1
    %192 = vsyncpa [#allocation4], 1

// kernel: tpu_custom_call.1
$region0: #{tpu_custom_call.1}
  #allocation0 [shape = 'u32[]', space=smem, size = 0x4, offset = 0x4, fixed_abs, tag = 'smem constant byte address 0x4 - core index']
  #allocation1 [shape = 'u32[144,128]{1,0:T(1,128)}', space=vmem, size = 0x12000, scoped, tag = 'internal scratch']
  %s0 = inlined_call_operand.hbm [shape: f32[16,128], index: 0, kind: input, shape index: {}]
  %s1 = inlined_call_operand.hbm [shape: f32[16,32], index: 1, kind: input, shape index: {}]
  %s2 = inlined_call_operand.hbm [shape: f32[32,256], index: 2, kind: input, shape index: {}]
  %s3 = inlined_call_operand.vmem [shape: f32[1,256], index: 3, kind: input, shape index: {}]
  %s4 = inlined_call_operand.hbm [shape: f32[16,128], index: 4, kind: output, shape index: {}]
  %s5 = sld [smem:[#allocation0]]
  $region38: #{tpu_custom_call.1} parent=0
    _
  %s7 = ssub.s32 1, %s5
  %s8 = scalar_select 0, %s7, %s5
  $region1: #{tpu_custom_call.1} parent=0
    #allocation2 [shape = 'u8[8192]{0}', space=vmem, size = 0x2000, scoped, tag = 'input window, operand 0, single buffered']
    #allocation3 [shape = 's32[1]{0}', space=sflag, size = 0x4, scoped, tag = 'scoped memory for tpu_custom_call.1']
    #allocation4 [shape = 's32[1]{0}', space=sflag, size = 0x4, scoped, tag = 'scoped memory for tpu_custom_call.1']
    #allocation5 [shape = 'u8[8192]{0}', space=vmem, size = 0x2000, scoped, tag = 'input window, operand 1, single buffered']
    #allocation6 [shape = 's32[1]{0}', space=sflag, size = 0x4, scoped, tag = 'scoped memory for tpu_custom_call.1']
    #allocation7 [shape = 'u8[32768]{0}', space=vmem, size = 0x8000, scoped, tag = 'input window, operand 2, single buffered']
    #allocation8 [shape = 'u8[8192]{0}', space=vmem, size = 0x2000, scoped, tag = 'output window, operand 0, single buffered']
    %9 = vsyncpa [#allocation3], 0
    %10 = vsyncpa [#allocation6], 0
    %11 = vsyncpa [#allocation4], 0
    // Predicated region
    $region2: #{tpu_custom_call.1} parent=1 // pred_check
      _
    $region3: #{tpu_custom_call.1} parent=1 // pred_check_branch
      %13 = sbr.rel (0) target = $region5
    $region4: #{tpu_custom_call.1} parent=1 // pred_region
      %s15 = ssub.s32 256, 256
      %16 = vsyncadd [#allocation3], %s15
      %s17 = sshll.u32 [#allocation2], 4
      %s18 = int_to_ptr.vmem [resolvable:$true] %s17
      %23 = dma.hbm_to_vmem [thread:$0]  %s0, 256, %s18, [#allocation3], 128, 128, 8
    $region5: #{tpu_custom_call.1} parent=1 // pred_fallthru
      _
    // Predicated region
    $region6: #{tpu_custom_call.1} parent=1 // pred_check
      _
    $region7: #{tpu_custom_call.1} parent=1 // pred_check_branch
      %25 = sbr.rel (0) target = $region9
    $region8: #{tpu_custom_call.1} parent=1 // pred_region
      %s27 = ssub.s32 256, 256
      %28 = vsyncadd [#allocation6], %s27
      %s29 = sshll.u32 [#allocation5], 4
      %s30 = int_to_ptr.vmem [resolvable:$true] %s29
      %35 = dma.hbm_to_vmem [thread:$0]  %s1, 256, %s30, [#allocation6], 128, 128, 8
    $region9: #{tpu_custom_call.1} parent=1 // pred_fallthru
      _
    // Predicated region
    $region10: #{tpu_custom_call.1} parent=1 // pred_check
      _
    $region11: #{tpu_custom_call.1} parent=1 // pred_check_branch
      %37 = sbr.rel (0) target = $region13
    $region12: #{tpu_custom_call.1} parent=1 // pred_region
      %s39 = ssub.s32 1024, 1024
      %40 = vsyncadd [#allocation6], %s39
      %s41 = sshll.u32 [#allocation7], 4
      %s42 = int_to_ptr.vmem [resolvable:$true] %s41
      %47 = dma.hbm_to_vmem [thread:$0]  %s2, 1024, %s42, [#allocation6], 256, 256, 16
    $region13: #{tpu_custom_call.1} parent=1 // pred_fallthru
      _
    // Predicated region
    $region14: #{tpu_custom_call.1} parent=1 // pred_check
      _
    $region15: #{tpu_custom_call.1} parent=1 // pred_check_branch
      %49 = sbr.rel (0) target = $region17
    $region16: #{tpu_custom_call.1} parent=1 // pred_region
      _
    $region17: #{tpu_custom_call.1} parent=1 // pred_fallthru
      _
    // Predicated region
    $region18: #{tpu_custom_call.1} parent=1 // pred_check
      _
    $region19: #{tpu_custom_call.1} parent=1 // pred_check_branch
      %51 = sbr.rel (0) target = $region21
    $region20: #{tpu_custom_call.1} parent=1 // pred_region
      %52 = dma.done [#allocation3], 256
    $region21: #{tpu_custom_call.1} parent=1 // pred_fallthru
      _
    // Predicated region
    $region22: #{tpu_custom_call.1} parent=1 // pred_check
      _
    $region23: #{tpu_custom_call.1} parent=1 // pred_check_branch
      %54 = sbr.rel (0) target = $region25
    $region24: #{tpu_custom_call.1} parent=1 // pred_region
      %55 = dma.done [#allocation6], 256
    $region25: #{tpu_custom_call.1} parent=1 // pred_fallthru
      _
    // Predicated region
    $region26: #{tpu_custom_call.1} parent=1 // pred_check
      _
    $region27: #{tpu_custom_call.1} parent=1 // pred_check_branch
      %57 = sbr.rel (0) target = $region29
    $region28: #{tpu_custom_call.1} parent=1 // pred_region
      %58 = dma.done [#allocation6], 1024
    $region29: #{tpu_custom_call.1} parent=1 // pred_fallthru
      _
    %v59 = vld [vmem:[#allocation5] sm:$0xff]
    %v60 = vld [vmem:[#allocation5 + $0x8] sm:$0xff]
    %v61 = vld [vmem:[#allocation7] sm:$0xff]
    %v62 = vld [vmem:[#allocation7 + $0x8] sm:$0xff]
    %v63 = vld [vmem:[#allocation7 + $0x10] sm:$0xff]
    %v64 = vld [vmem:[#allocation7 + $0x18] sm:$0xff]
    %v65 = vld [vmem:[#allocation7 + $0x20] sm:$0xff]
    %v66 = vld [vmem:[#allocation7 + $0x28] sm:$0xff]
    %v67 = vld [vmem:[#allocation7 + $0x30] sm:$0xff]
    %v68 = vld [vmem:[#allocation7 + $0x38] sm:$0xff]
    %v69 = vld [vmem:[%s3] sm:$0x3]
    %v71 = vlaneseq
    %v72 = vshrl.u32 %v71, 7
    %v73 = vsub.s32 0, %v72
    %v74 = vrot.slane %v69, %v73
    %v75 = vlaneseq
    %v76 = vshrl.u32 %v75, 7
    %v77 = vsub.s32 1, %v76
    %v78 = vrot.slane %v69, %v77
    %vm81 = vcmask 261120
    %v83 = vsel %vm81, %v59, 0
    %v86 = vsel %vm81, %v60, 0
    %88 = vmatprep.subr.mxu0 %v62
    %89 = vmatpush1.msra.mxu0 %v61
    %90 = vmatprep.subr.mxu0 %v64
    %91 = vmatpush1.msra.mxu0 %v63
    %92 = vmatprep.subr.mxu0 %v66
    %93 = vmatpush1.msra.mxu0 %v65
    %94 = vmatprep.subr.mxu0 %v68
    %95 = vmatpush1.msra.mxu0 %v67
    %96 = vmatprep.subr.mxu0 0.0
    %97 = vmatpush1.msra.mxu0 0.0
    %98 = vmatprep.subr.mxu0 0.0
    %99 = vmatpush1.msra.mxu0 0.0
    %100 = vmatprep.subr.mxu0 0.0
    %101 = vmatpush1.msra.mxu0 0.0
    %102 = vmatprep.subr.mxu0 0.0
    %103 = vmatpush1.msra.mxu0 0.0
    %104 = vmatprep.subr.mxu0 0.0
    %105 = vmatpush1.msra.mxu0 0.0
    %106 = vmatprep.subr.mxu0 0.0
    %107 = vmatpush1.msra.mxu0 0.0
    %108 = vmatprep.subr.mxu0 0.0
    %109 = vmatpush1.msra.mxu0 0.0
    %110 = vmatprep.subr.mxu0 0.0
    %111 = vmatpush1.msra.mxu0 0.0
    %112 = vmatprep.subr.mxu0 0.0
    %113 = vmatpush1.msra.mxu0 0.0
    %114 = vmatprep.subr.mxu0 0.0
    %115 = vmatpush1.msra.mxu0 0.0
    %116 = vmatprep.subr.mxu0 0.0
    %117 = vmatpush1.msra.mxu0 0.0
    %118 = vmatprep.subr.mxu0 0.0
    %119 = vmatpush1.msra.mxu0 0.0
    %120 = vmatprep.subr.mxu0 0.0
    %121 = vmatpush1.msra.mxu0 0.0
    %122 = vmatprep.subr.mxu0 0.0
    %123 = vmatpush1.msra.mxu0 0.0
    %124 = vmatprep.subr.mxu0 0.0
    %125 = vmatpush1.msra.mxu0 0.0
    %126 = vmatprep.subr.mxu0 0.0
    %127 = vmatpush1.msra.mxu0 0.0
    %128 = vmatprep.subr.mxu0 0.0
    %129 = vmatpush1.msra.mxu0 0.0
    %130 = vmatprep.subr.mxu0 0.0
    %131 = vmatpush1.msra.mxu0 0.0
    %132 = vmatprep.subr.mxu0 0.0
    %133 = vmatpush1.msra.mxu0 0.0
    %134 = vmatprep.subr.mxu0 0.0
    %135 = vmatpush1.msra.mxu0 0.0
    %136 = vmatprep.subr.mxu0 0.0
    %137 = vmatpush1.msra.mxu0 0.0
    %138 = vmatprep.subr.mxu0 0.0
    %139 = vmatpush1.msra.mxu0 0.0
    %140 = vmatprep.subr.mxu0 0.0
    %141 = vmatpush1.msra.mxu0 0.0
    %142 = vmatprep.subr.mxu0 0.0
    %143 = vmatpush1.msra.mxu0 0.0
    %144 = vmatprep.subr.mxu0 0.0
    %145 = vmatpush1.msra.mxu0 0.0
    %146 = vmatprep.subr.mxu0 0.0
    %147 = vmatpush1.msra.mxu0 0.0
    %148 = vmatprep.subr.mxu0 0.0
    %149 = vmatpush1.msra.mxu0 0.0
    %150 = vmatprep.subr.mxu0 0.0
    %151 = vmatpush1.msra.mxu0 0.0
    %152 = vmatprep.mubr.f32.mxu0 0.0
    %153 = vmatmul.mubr.f32.gmra.mrb[0].mxu0 %v83
    %v154 = vpop.f32.mrb[0].mxu0
    %v155 = vadd.f32 %v74, %v154
    %v156 = vpop.f32.mrb[0].mxu0
    %v157 = vadd.f32 %v78, %v156
    %158 = vmatprep.mubr.f32.mxu0 0.0
    %159 = vmatmul.mubr.f32.gmra.mrb[0].mxu0 %v86
    %v160 = vpop.f32.mrb[0].mxu0
    %v161 = vadd.f32 %v74, %v160
    %v162 = vpop.f32.mrb[0].mxu0
    %v163 = vadd.f32 %v78, %v162
    %164 = vdwg.mxu0
    %v165 = vtanh.pop %v155
    %v166 = vtanh.pop %v161
    %v167 = vld [vmem:[#allocation2] sm:$0xff]
    %v168 = vld [vmem:[#allocation2 + $0x8] sm:$0xff]
    %v169 = vmul.f32 %v165, %v167
    %v170 = vmul.f32 %v166, %v168
    %v171 = vadd.f32 %v169, %v157
    %v172 = vadd.f32 %v170, %v163
    %173 = vst [vmem:[#allocation8] sm:$0xff] %v171
    %174 = vst [vmem:[#allocation8 + $0x8] sm:$0xff] %v172
    // Predicated region
    $region30: #{tpu_custom_call.1} parent=1 // pred_check
      _
    $region31: #{tpu_custom_call.1} parent=1 // pred_check_branch
      %176 = sbr.rel (0) target = $region33
    $region32: #{tpu_custom_call.1} parent=1 // pred_region
      %s178 = ssub.s32 256, 256
      %179 = vsyncadd [#allocation4], %s178
      %s180 = sshll.u32 [#allocation8], 4
      %s181 = int_to_ptr.vmem [resolvable:$true] %s180
      %186 = dma.vmem_to_hbm [thread:$0]  %s181, 256, %s4, [#allocation4], 128, 128, 8
    $region33: #{tpu_custom_call.1} parent=1 // pred_fallthru
      _
    // Predicated region
    $region34: #{tpu_custom_call.1} parent=1 // pred_check
      _
    $region35: #{tpu_custom_call.1} parent=1 // pred_check_branch
      %188 = sbr.rel (0) target = $region37
    $region36: #{tpu_custom_call.1} parent=1 // pred_region
      %189 = dma.done [#allocation4], 256
    $region37: #{tpu_custom_call.1} parent=1 // pred_fallthru
      _
    %190 = vsyncpa [#allocation3], 1
    %191 = vsyncpa [#allocation6], 1
    %192 = vsyncpa [#allocation4], 1

</llo_original>
